<compile_context>
chip_gen: v6e
topology: v6e:2x2x1
jax: 0.10.0
libtpu: 0.0.40
codegen_flags: <defaults>
</compile_context>

<pallas_src>
import jax
import jax.numpy as jnp
from jax.experimental import pallas as pl
from jax.experimental.pallas import tpu as pltpu


_LANE = 128
_SUBLANE = 8


def _ceil_to(n, m):
    return ((n + m - 1) // m) * m


# ---------------------------------------------------------------------------
# Kernels
# ---------------------------------------------------------------------------
def mlp_kernel_lanes(xt_ref, w1c_ref, b1c_ref, w2c_ref, b2_ref, o_ref):
    """input_units == 1 path, batch on the lane axis.

    xt:  (1, tb)       batch lane-dense
    w1c: (hidden, 1)   first-layer weights as a column
    b1c: (hidden, 1)
    w2c: (hidden, 1)   second-layer weights as a column
    b2:  (1,)          scalar bias in SMEM
    o:   (1, tb)       lane-dense output (unmasked vst, contiguous writeback)
    """
    xt = xt_ref[...]                                   # (1, tb)
    # First layer: contraction depth 1 -> pure VPU broadcast multiply (MXU idle).
    h = w1c_ref[...] * xt                              # (hidden, tb)
    h = jnp.maximum(h + b1c_ref[...], 0.0)             # bias + ReLU in f32
    # Dropout(p=0) is the identity in both train and eval -> no-op.
    # Output layer (N=1): multiply by the w2 column, reduce over hidden (sublane axis).
    y = jnp.sum(h * w2c_ref[...], axis=0, keepdims=True)   # (1, tb)
    o_ref[...] = (y + b2_ref[0]).astype(o_ref.dtype)


def mlp_kernel_rows(x_ref, w1_ref, b1_ref, w2t_ref, b2_ref, o_ref):
    """General input_units > 1 path, batch on the sublane axis.

    x:   (tb, K)   w1: (K, hidden)   b1: (1, hidden)
    w2t: (1, hidden)   second-layer weights pre-transposed (lane-dense row)
    b2:  (1,) in SMEM  o: (tb, 1)
    """
    x = x_ref[...]
    w1 = w1_ref[...]
    k = x.shape[1]
    if k <= 8:
        # Contraction depth far below 128: a few VPU multiply-adds beat the
        # MXU weight-push / result-pop round-trip.
        h = x[:, 0:1] * w1[0:1, :]
        for kk in range(1, k):
            h = h + x[:, kk:kk + 1] * w1[kk:kk + 1, :]
    else:
        h = jnp.dot(x, w1, preferred_element_type=jnp.float32)
    h = jnp.maximum(h + b1_ref[...], 0.0)
    # Dropout(p=0) is the identity.
    y = jnp.sum(h * w2t_ref[...], axis=-1, keepdims=True)   # (tb, 1)
    o_ref[...] = (y + b2_ref[0]).astype(o_ref.dtype)


# ---------------------------------------------------------------------------
# Generation-aware sizing helpers
# ---------------------------------------------------------------------------
def _tpu_caps():
    """(physical VMEM bytes per TensorCore, TensorCores per chip)."""
    kind = ""
    try:
        kind = jax.devices()[0].device_kind.lower()
    except Exception:  # pragma: no cover - defensive
        pass
    if "v7" in kind or "7x" in kind:
        return 64 << 20, 2           # v7x: 64 MiB VMEM / TC, 2 TCs
    return 128 << 20, 1              # v5e / v6e: 128 MiB, 1 TC


def _lane_gridless_bytes(batch, hidden):
    pb = _ceil_to(batch, _LANE)
    sh = _ceil_to(hidden, _SUBLANE)
    return (2 * _SUBLANE * pb * 4        # (1, batch) in + out, sublane-padded
            + 2 * sh * pb * 4            # (hidden, batch) intermediate (+headroom)
            + 3 * sh * _LANE * 4)        # w1c, b1c, w2c as (hidden, 1), lane-padded


def _lane_grid_step_bytes(tb, hidden):
    sh = _ceil_to(hidden, _SUBLANE)
    return (2 * 2 * _SUBLANE * tb * 4    # double-buffered x and out tiles
            + 2 * sh * tb * 4            # intermediate (+headroom)
            + 2 * 3 * sh * _LANE * 4)    # resident weights, double-buffered


def _rows_gridless_bytes(batch, k, hidden):
    sb = _ceil_to(batch, _SUBLANE)
    lh = _ceil_to(hidden, _LANE)
    return (sb * _ceil_to(k, _LANE) * 4
            + 2 * sb * lh * 4
            + sb * _LANE * 4
            + (_ceil_to(k, _SUBLANE) + 2 * _SUBLANE) * lh * 4)


def _rows_grid_step_bytes(tb, k, hidden):
    lh = _ceil_to(hidden, _LANE)
    return (2 * tb * _ceil_to(k, _LANE) * 4
            + 2 * tb * lh * 4
            + 2 * tb * _LANE * 4
            + 2 * (_ceil_to(k, _SUBLANE) + 2 * _SUBLANE) * lh * 4)


def _pick_tile(batch, unit, budget, step_bytes_fn, num_tc):
    """Largest power-of-two multiple of `unit` whose per-step working set fits the
    budget; capped so a 2-TC chip gets at least two grid steps."""
    padded = _ceil_to(batch, unit)
    cap = padded if num_tc < 2 else max(unit, padded // 2)
    tb = unit
    cand = unit
    while cand <= cap and step_bytes_fn(cand) <= budget:
        tb = cand
        cand *= 2
    return tb


# ---------------------------------------------------------------------------
# Wrapper
# ---------------------------------------------------------------------------
def simple_mlp_forward(x, w1, b1, w2, b2, *, force_grid=None):
    """Forward pass of SimpleMLP: Linear(K->hidden) -> ReLU -> Dropout(0) -> Linear(hidden->1).

    x: (batch, K)   w1: (K, hidden)   b1: (hidden,)/(1,hidden)   w2: (hidden, 1)   b2: (1,)/(1,1)
    force_grid: None = auto (size / generation aware); True/False = override (testing).
    """
    batch, k = x.shape
    hidden = w1.shape[1]
    x = x.astype(jnp.float32)

    physical_vmem, num_tc = _tpu_caps()
    vmem_budget = physical_vmem // 2          # scoped budget with headroom
    compiler_common = dict(vmem_limit_bytes=vmem_budget)

    # Advisory hint: ~(2K + 3) flops per (batch, hidden) element; tiny byte traffic.
    cost = pl.CostEstimate(
        flops=int(batch * hidden * (2 * k + 3)),
        transcendentals=0,
        bytes_accessed=int(4 * (batch * k + batch + k * hidden + 2 * hidden + 1)),
    )

    b2s = b2.reshape(1).astype(jnp.float32)

    if k == 1:
        # ---- lane-dense path: batch on the lane axis (free reshapes, K == 1) ----
        xt = x.reshape(1, batch)
        w1c = w1.reshape(hidden, 1).astype(jnp.float32)
        b1c = b1.reshape(hidden, 1).astype(jnp.float32)
        w2c = w2.reshape(hidden, 1).astype(jnp.float32)

        gridless_fits = _lane_gridless_bytes(batch, hidden) <= vmem_budget
        if force_grid is None:
            use_grid = (not gridless_fits) or (num_tc >= 2 and batch >= 2 * 512)
        else:
            use_grid = bool(force_grid)

        if not use_grid:
            out = pl.pallas_call(
                mlp_kernel_lanes,
                out_shape=jax.ShapeDtypeStruct((1, batch), jnp.float32),
                in_specs=[
                    pl.BlockSpec(memory_space=pltpu.VMEM),   # xt
                    pl.BlockSpec(memory_space=pltpu.VMEM),   # w1c
                    pl.BlockSpec(memory_space=pltpu.VMEM),   # b1c
                    pl.BlockSpec(memory_space=pltpu.VMEM),   # w2c
                    pl.BlockSpec(memory_space=pltpu.SMEM),   # b2 scalar
                ],
                out_specs=pl.BlockSpec(memory_space=pltpu.VMEM),
                compiler_params=pltpu.CompilerParams(**compiler_common),
                cost_estimate=cost,
            )(xt, w1c, b1c, w2c, b2s)
            return out.reshape(batch, 1)

        tb = _pick_tile(batch, _LANE, vmem_budget,
                        lambda t: _lane_grid_step_bytes(t, hidden), num_tc)
        padded = _ceil_to(batch, tb)
        if padded != batch:
            xt = jnp.pad(xt, ((0, 0), (0, padded - batch)))
        grid = (padded // tb,)
        out = pl.pallas_call(
            mlp_kernel_lanes,
            out_shape=jax.ShapeDtypeStruct((1, padded), jnp.float32),
            grid=grid,
            in_specs=[
                pl.BlockSpec((1, tb), lambda i: (0, i)),        # x tile, lane-dense
                pl.BlockSpec((hidden, 1), lambda i: (0, 0)),    # w1 resident
                pl.BlockSpec((hidden, 1), lambda i: (0, 0)),    # b1 resident
                pl.BlockSpec((hidden, 1), lambda i: (0, 0)),    # w2 resident
                pl.BlockSpec(memory_space=pltpu.SMEM),          # b2 scalar
            ],
            out_specs=pl.BlockSpec((1, tb), lambda i: (0, i)),  # lane-dense output
            compiler_params=pltpu.CompilerParams(
                dimension_semantics=("parallel",), **compiler_common),
            cost_estimate=cost,
        )(xt, w1c, b1c, w2c, b2s)
        return out[:, :batch].reshape(batch, 1)

    # ---- K > 1 path: batch on the sublane axis; small K handled on the VPU ----
    w1r = w1.astype(jnp.float32)
    b1r = b1.reshape(1, hidden).astype(jnp.float32)
    w2t = w2.reshape(1, hidden).astype(jnp.float32)

    gridless_fits = _rows_gridless_bytes(batch, k, hidden) <= vmem_budget
    if force_grid is None:
        use_grid = (not gridless_fits) or (num_tc >= 2 and batch >= 2 * 512)
    else:
        use_grid = bool(force_grid)

    if not use_grid:
        return pl.pallas_call(
            mlp_kernel_rows,
            out_shape=jax.ShapeDtypeStruct((batch, 1), jnp.float32),
            in_specs=[
                pl.BlockSpec(memory_space=pltpu.VMEM),
                pl.BlockSpec(memory_space=pltpu.VMEM),
                pl.BlockSpec(memory_space=pltpu.VMEM),
                pl.BlockSpec(memory_space=pltpu.VMEM),
                pl.BlockSpec(memory_space=pltpu.SMEM),
            ],
            out_specs=pl.BlockSpec(memory_space=pltpu.VMEM),
            compiler_params=pltpu.CompilerParams(**compiler_common),
            cost_estimate=cost,
        )(x, w1r, b1r, w2t, b2s)

    tb = _pick_tile(batch, _SUBLANE, vmem_budget,
                    lambda t: _rows_grid_step_bytes(t, k, hidden), num_tc)
    padded = _ceil_to(batch, tb)
    xr = x if padded == batch else jnp.pad(x, ((0, padded - batch), (0, 0)))
    grid = (padded // tb,)
    # TODO(synk): a lane-dense (1, batch) output layout would also avoid the masked
    # (tb, 1) stores on this K > 1 path; kept row-major to limit transpose plumbing.
    out = pl.pallas_call(
        mlp_kernel_rows,
        out_shape=jax.ShapeDtypeStruct((padded, 1), jnp.float32),
        grid=grid,
        in_specs=[
            pl.BlockSpec((tb, k), lambda i: (i, 0)),
            pl.BlockSpec((k, hidden), lambda i: (0, 0)),
            pl.BlockSpec((1, hidden), lambda i: (0, 0)),
            pl.BlockSpec((1, hidden), lambda i: (0, 0)),
            pl.BlockSpec(memory_space=pltpu.SMEM),
        ],
        out_specs=pl.BlockSpec((tb, 1), lambda i: (i, 0)),
        compiler_params=pltpu.CompilerParams(
            dimension_semantics=("parallel",), **compiler_common),
        cost_estimate=cost,
    )(xr, w1r, b1r, w2t, b2s)
    return out[:batch]


def init_params(key, input_units=1, hidden_units=256):
    # Deterministic synthetic init (mirrors nn.Linear's U(-1/sqrt(fan_in), 1/sqrt(fan_in))).
    k1, k2, k3, k4 = jax.random.split(key, 4)
    bound1 = 1.0 / jnp.sqrt(jnp.float32(input_units))
    bound2 = 1.0 / jnp.sqrt(jnp.float32(hidden_units))
    w1 = jax.random.uniform(k1, (input_units, hidden_units), jnp.float32, -bound1, bound1)
    b1 = jax.random.uniform(k2, (1, hidden_units), jnp.float32, -bound1, bound1)
    w2 = jax.random.uniform(k3, (hidden_units, 1), jnp.float32, -bound2, bound2)
    b2 = jax.random.uniform(k4, (1, 1), jnp.float32, -bound2, bound2)
    return w1, b1, w2, b2


if __name__ == "__main__":
    key = jax.random.PRNGKey(0)
    kx, kp, kx3, kp3 = jax.random.split(key, 4)

    # Module defaults: input_units=1, hidden_units=256, dropout p=0.
    batch, input_units, hidden_units = 8, 1, 256
    x = jax.random.normal(kx, (batch, input_units), jnp.float32)
    w1, b1, w2, b2 = init_params(kp, input_units, hidden_units)

    out = jax.block_until_ready(simple_mlp_forward(x, w1, b1, w2, b2))
    ref = jnp.maximum(x @ w1 + b1, 0.0) @ w2 + b2
    assert out.shape == (batch, 1)
    assert jnp.allclose(out, ref, atol=1e-4, rtol=1e-4)

    # Exercise the auto-sized, lane-dense grid path (pad to a 128-multiple tile,
    # "parallel" batch axis, slice back).
    big_batch = 1000
    xb = jax.random.normal(kx, (big_batch, input_units), jnp.float32)
    outb = jax.block_until_ready(
        simple_mlp_forward(xb, w1, b1, w2, b2, force_grid=True))
    refb = jnp.maximum(xb @ w1 + b1, 0.0) @ w2 + b2
    assert outb.shape == (big_batch, 1)
    assert jnp.allclose(outb, refb, atol=1e-4, rtol=1e-4)

    # Exercise the small-K (>1) VPU row path.
    x3 = jax.random.normal(kx3, (16, 3), jnp.float32)
    w13, b13, w23, b23 = init_params(kp3, 3, 64)
    out3 = jax.block_until_ready(simple_mlp_forward(x3, w13, b13, w23, b23))
    ref3 = jnp.maximum(x3 @ w13 + b13, 0.0) @ w23 + b23
    assert out3.shape == (16, 1)
    assert jnp.allclose(out3, ref3, atol=1e-4, rtol=1e-4)

    print("KERNEL_OK")
</pallas_src>

<mosaic_0001>
module attributes {stable_mosaic.version = 11 : i64} {
  func.func @mlp_kernel_lanes(%arg0: memref<1x8xf32, #tpu.memory_space<vmem>>, %arg1: memref<256x1xf32, #tpu.memory_space<vmem>>, %arg2: memref<256x1xf32, #tpu.memory_space<vmem>>, %arg3: memref<256x1xf32, #tpu.memory_space<vmem>>, %arg4: memref<1xf32, #tpu.memory_space<smem>>, %arg5: memref<1x8xf32, #tpu.memory_space<vmem>>) attributes {dimension_semantics = [], scalar_prefetch = 0 : i64, scratch_operands = 0 : i64, tpu.core_type = #tpu.core_type<tc>} {
    %c0 = arith.constant 0 : index
    %c0_0 = arith.constant 0 : index
    %0 = vector.load %arg0[%c0, %c0_0] : memref<1x8xf32, #tpu.memory_space<vmem>>, vector<1x8xf32>
    %c0_1 = arith.constant 0 : index
    %c0_2 = arith.constant 0 : index
    %1 = vector.load %arg1[%c0_1, %c0_2] : memref<256x1xf32, #tpu.memory_space<vmem>>, vector<256x1xf32>
    %2 = vector.broadcast %1 : vector<256x1xf32> to vector<256x8xf32>
    %3 = vector.broadcast %0 : vector<1x8xf32> to vector<256x8xf32>
    %4 = arith.mulf %2, %3 : vector<256x8xf32>
    %c0_3 = arith.constant 0 : index
    %c0_4 = arith.constant 0 : index
    %5 = vector.load %arg2[%c0_3, %c0_4] : memref<256x1xf32, #tpu.memory_space<vmem>>, vector<256x1xf32>
    %6 = vector.broadcast %5 : vector<256x1xf32> to vector<256x8xf32>
    %7 = arith.addf %4, %6 : vector<256x8xf32>
    %cst = arith.constant 0.000000e+00 : f32
    %8 = vector.broadcast %cst : f32 to vector<256x8xf32>
    %9 = arith.maximumf %7, %8 : vector<256x8xf32>
    %c0_5 = arith.constant 0 : index
    %c0_6 = arith.constant 0 : index
    %10 = vector.load %arg3[%c0_5, %c0_6] : memref<256x1xf32, #tpu.memory_space<vmem>>, vector<256x1xf32>
    %11 = vector.broadcast %10 : vector<256x1xf32> to vector<256x8xf32>
    %12 = arith.mulf %9, %11 : vector<256x8xf32>
    %cst_7 = arith.constant dense<0.000000e+00> : vector<8xf32>
    %13 = vector.multi_reduction <add>, %12, %cst_7 [0] : vector<256x8xf32> to vector<8xf32>
    %14 = vector.shape_cast %13 : vector<8xf32> to vector<1x8xf32>
    %c0_8 = arith.constant 0 : index
    %15 = memref.load %arg4[%c0_8] : memref<1xf32, #tpu.memory_space<smem>>
    %16 = vector.broadcast %15 : f32 to vector<1x8xf32>
    %17 = arith.addf %14, %16 : vector<1x8xf32>
    %c0_9 = arith.constant 0 : index
    %c0_10 = arith.constant 0 : index
    %18 = vector.load %arg5[%c0_9, %c0_10] : memref<1x8xf32, #tpu.memory_space<vmem>>, vector<1x8xf32>
    tpu.vector_store %arg5[%c0_9, %c0_10], %17 {strides = array<i32>} : memref<1x8xf32, #tpu.memory_space<vmem>>, vector<1x8xf32>,
    return
  }
}

</mosaic_0001>

<llo_original>
// kernel: tpu_custom_call.1
$region0: #{tpu_custom_call.1}
  #allocation0 [shape = 'u32[]', space=smem, size = 0x4, offset = 0x4, fixed_abs, tag = 'smem constant byte address 0x4 - core index']
  #allocation1 [shape = 'u32[144,128]{1,0:T(1,128)}', space=vmem, size = 0x12000, scoped, tag = 'internal scratch']
  #allocation2 [shape = 'f32[1]{0:T(128)S(6)}', space=smem, size = 0x200, scoped, tag = 'scoped memory for tpu_custom_call.1']
  %s0 = inlined_call_operand.vmem [shape: f32[1,8], index: 0, kind: input, shape index: {}]
  %s1 = inlined_call_operand.vmem [shape: f32[256,1], index: 1, kind: input, shape index: {}]
  %s2 = inlined_call_operand.vmem [shape: f32[256,1], index: 2, kind: input, shape index: {}]
  %s3 = inlined_call_operand.vmem [shape: f32[256,1], index: 3, kind: input, shape index: {}]
  %s4 = inlined_call_operand.<no memory space> [shape: f32[1], index: 4, kind: input, shape index: {}]
  %s5 = inlined_call_operand.hbm [shape: f32[1,8], index: 5, kind: output, shape index: {}]
  %s6 = sld [smem:[#allocation0]]
  $region30: #{tpu_custom_call.1} parent=0
    _
  %s8 = ssub.s32 1, %s6
  %s9 = scalar_select 0, %s8, %s6
  %10 = sst [smem:[#allocation2]] %s4
  $region1: #{tpu_custom_call.1} parent=0
    #allocation3 [shape = 'u8[512]{0}', space=vmem, size = 0x400, scoped, tag = 'output window, operand 0, single buffered']
    #allocation4 [shape = 's32[1]{0}', space=sflag, size = 0x4, scoped, tag = 'scoped memory for tpu_custom_call.1']
    %11 = vsyncpa [#allocation4], 0
    // Predicated region
    $region2: #{tpu_custom_call.1} parent=1 // pred_check
      _
    $region3: #{tpu_custom_call.1} parent=1 // pred_check_branch
      %13 = sbr.rel (0) target = $region5
    $region4: #{tpu_custom_call.1} parent=1 // pred_region
      _
    $region5: #{tpu_custom_call.1} parent=1 // pred_fallthru
      _
    // Predicated region
    $region6: #{tpu_custom_call.1} parent=1 // pred_check
      _
    $region7: #{tpu_custom_call.1} parent=1 // pred_check_branch
      %15 = sbr.rel (0) target = $region9
    $region8: #{tpu_custom_call.1} parent=1 // pred_region
      _
    $region9: #{tpu_custom_call.1} parent=1 // pred_fallthru
      _
    // Predicated region
    $region10: #{tpu_custom_call.1} parent=1 // pred_check
      _
    $region11: #{tpu_custom_call.1} parent=1 // pred_check_branch
      %17 = sbr.rel (0) target = $region13
    $region12: #{tpu_custom_call.1} parent=1 // pred_region
      _
    $region13: #{tpu_custom_call.1} parent=1 // pred_fallthru
      _
    // Predicated region
    $region14: #{tpu_custom_call.1} parent=1 // pred_check
      _
    $region15: #{tpu_custom_call.1} parent=1 // pred_check_branch
      %19 = sbr.rel (0) target = $region17
    $region16: #{tpu_custom_call.1} parent=1 // pred_region
      _
    $region17: #{tpu_custom_call.1} parent=1 // pred_fallthru
      _
    // Predicated region
    $region18: #{tpu_custom_call.1} parent=1 // pred_check
      _
    $region19: #{tpu_custom_call.1} parent=1 // pred_check_branch
      %21 = sbr.rel (0) target = $region21
    $region20: #{tpu_custom_call.1} parent=1 // pred_region
      _
    $region21: #{tpu_custom_call.1} parent=1 // pred_fallthru
      _
    %v22 = vld [vmem:[%s0] sm:$0x1]
    %v23 = vld [vmem:[%s1] sm:$0xff]
    %v24 = vld [vmem:[%s1 + $0x8] sm:$0xff]
    %v25 = vld [vmem:[%s1 + $0x10] sm:$0xff]
    %v26 = vld [vmem:[%s1 + $0x18] sm:$0xff]
    %v27 = vld [vmem:[%s1 + $0x20] sm:$0xff]
    %v28 = vld [vmem:[%s1 + $0x28] sm:$0xff]
    %v29 = vld [vmem:[%s1 + $0x30] sm:$0xff]
    %v30 = vld [vmem:[%s1 + $0x38] sm:$0xff]
    %v31 = vld [vmem:[%s1 + $0x40] sm:$0xff]
    %v32 = vld [vmem:[%s1 + $0x48] sm:$0xff]
    %v33 = vld [vmem:[%s1 + $0x50] sm:$0xff]
    %v34 = vld [vmem:[%s1 + $0x58] sm:$0xff]
    %v35 = vld [vmem:[%s1 + $0x60] sm:$0xff]
    %v36 = vld [vmem:[%s1 + $0x68] sm:$0xff]
    %v37 = vld [vmem:[%s1 + $0x70] sm:$0xff]
    %v38 = vld [vmem:[%s1 + $0x78] sm:$0xff]
    %v39 = vld [vmem:[%s1 + $0x80] sm:$0xff]
    %v40 = vld [vmem:[%s1 + $0x88] sm:$0xff]
    %v41 = vld [vmem:[%s1 + $0x90] sm:$0xff]
    %v42 = vld [vmem:[%s1 + $0x98] sm:$0xff]
    %v43 = vld [vmem:[%s1 + $0xa0] sm:$0xff]
    %v44 = vld [vmem:[%s1 + $0xa8] sm:$0xff]
    %v45 = vld [vmem:[%s1 + $0xb0] sm:$0xff]
    %v46 = vld [vmem:[%s1 + $0xb8] sm:$0xff]
    %v47 = vld [vmem:[%s1 + $0xc0] sm:$0xff]
    %v48 = vld [vmem:[%s1 + $0xc8] sm:$0xff]
    %v49 = vld [vmem:[%s1 + $0xd0] sm:$0xff]
    %v50 = vld [vmem:[%s1 + $0xd8] sm:$0xff]
    %v51 = vld [vmem:[%s1 + $0xe0] sm:$0xff]
    %v52 = vld [vmem:[%s1 + $0xe8] sm:$0xff]
    %v53 = vld [vmem:[%s1 + $0xf0] sm:$0xff]
    %v54 = vld [vmem:[%s1 + $0xf8] sm:$0xff]
    %56 = vset.pattern.permute.xlu0 0
    %57 = vperm.xlu0 %56, %v23
    %v58 = vpop.permute.xlu0 %57
    %61 = vset.pattern.permute.xlu0 0
    %62 = vperm.xlu0 %61, %v24
    %v63 = vpop.permute.xlu0 %62
    %66 = vset.pattern.permute.xlu0 0
    %67 = vperm.xlu0 %66, %v25
    %v68 = vpop.permute.xlu0 %67
    %71 = vset.pattern.permute.xlu0 0
    %72 = vperm.xlu0 %71, %v26
    %v73 = vpop.permute.xlu0 %72
    %76 = vset.pattern.permute.xlu0 0
    %77 = vperm.xlu0 %76, %v27
    %v78 = vpop.permute.xlu0 %77
    %81 = vset.pattern.permute.xlu0 0
    %82 = vperm.xlu0 %81, %v28
    %v83 = vpop.permute.xlu0 %82
    %86 = vset.pattern.permute.xlu0 0
    %87 = vperm.xlu0 %86, %v29
    %v88 = vpop.permute.xlu0 %87
    %91 = vset.pattern.permute.xlu0 0
    %92 = vperm.xlu0 %91, %v30
    %v93 = vpop.permute.xlu0 %92
    %96 = vset.pattern.permute.xlu0 0
    %97 = vperm.xlu0 %96, %v31
    %v98 = vpop.permute.xlu0 %97
    %101 = vset.pattern.permute.xlu0 0
    %102 = vperm.xlu0 %101, %v32
    %v103 = vpop.permute.xlu0 %102
    %106 = vset.pattern.permute.xlu0 0
    %107 = vperm.xlu0 %106, %v33
    %v108 = vpop.permute.xlu0 %107
    %111 = vset.pattern.permute.xlu0 0
    %112 = vperm.xlu0 %111, %v34
    %v113 = vpop.permute.xlu0 %112
    %116 = vset.pattern.permute.xlu0 0
    %117 = vperm.xlu0 %116, %v35
    %v118 = vpop.permute.xlu0 %117
    %121 = vset.pattern.permute.xlu0 0
    %122 = vperm.xlu0 %121, %v36
    %v123 = vpop.permute.xlu0 %122
    %126 = vset.pattern.permute.xlu0 0
    %127 = vperm.xlu0 %126, %v37
    %v128 = vpop.permute.xlu0 %127
    %131 = vset.pattern.permute.xlu0 0
    %132 = vperm.xlu0 %131, %v38
    %v133 = vpop.permute.xlu0 %132
    %136 = vset.pattern.permute.xlu0 0
    %137 = vperm.xlu0 %136, %v39
    %v138 = vpop.permute.xlu0 %137
    %141 = vset.pattern.permute.xlu0 0
    %142 = vperm.xlu0 %141, %v40
    %v143 = vpop.permute.xlu0 %142
    %146 = vset.pattern.permute.xlu0 0
    %147 = vperm.xlu0 %146, %v41
    %v148 = vpop.permute.xlu0 %147
    %151 = vset.pattern.permute.xlu0 0
    %152 = vperm.xlu0 %151, %v42
    %v153 = vpop.permute.xlu0 %152
    %156 = vset.pattern.permute.xlu0 0
    %157 = vperm.xlu0 %156, %v43
    %v158 = vpop.permute.xlu0 %157
    %161 = vset.pattern.permute.xlu0 0
    %162 = vperm.xlu0 %161, %v44
    %v163 = vpop.permute.xlu0 %162
    %166 = vset.pattern.permute.xlu0 0
    %167 = vperm.xlu0 %166, %v45
    %v168 = vpop.permute.xlu0 %167
    %171 = vset.pattern.permute.xlu0 0
    %172 = vperm.xlu0 %171, %v46
    %v173 = vpop.permute.xlu0 %172
    %176 = vset.pattern.permute.xlu0 0
    %177 = vperm.xlu0 %176, %v47
    %v178 = vpop.permute.xlu0 %177
    %181 = vset.pattern.permute.xlu0 0
    %182 = vperm.xlu0 %181, %v48
    %v183 = vpop.permute.xlu0 %182
    %186 = vset.pattern.permute.xlu0 0
    %187 = vperm.xlu0 %186, %v49
    %v188 = vpop.permute.xlu0 %187
    %191 = vset.pattern.permute.xlu0 0
    %192 = vperm.xlu0 %191, %v50
    %v193 = vpop.permute.xlu0 %192
    %196 = vset.pattern.permute.xlu0 0
    %197 = vperm.xlu0 %196, %v51
    %v198 = vpop.permute.xlu0 %197
    %201 = vset.pattern.permute.xlu0 0
    %202 = vperm.xlu0 %201, %v52
    %v203 = vpop.permute.xlu0 %202
    %206 = vset.pattern.permute.xlu0 0
    %207 = vperm.xlu0 %206, %v53
    %v208 = vpop.permute.xlu0 %207
    %211 = vset.pattern.permute.xlu0 0
    %212 = vperm.xlu0 %211, %v54
    %v213 = vpop.permute.xlu0 %212
    %v216 = vlaneseq
    %v217 = vshrl.u32 %v216, 7
    %v218 = vsub.s32 0, %v217
    %v219 = vrot.slane %v22, %v218
    %v221 = vmul.f32 %v58, %v219
    %v222 = vmul.f32 %v63, %v219
    %v223 = vmul.f32 %v68, %v219
    %v224 = vmul.f32 %v73, %v219
    %v225 = vmul.f32 %v78, %v219
    %v226 = vmul.f32 %v83, %v219
    %v227 = vmul.f32 %v88, %v219
    %v228 = vmul.f32 %v93, %v219
    %v229 = vmul.f32 %v98, %v219
    %v230 = vmul.f32 %v103, %v219
    %v231 = vmul.f32 %v108, %v219
    %v232 = vmul.f32 %v113, %v219
    %v233 = vmul.f32 %v118, %v219
    %v234 = vmul.f32 %v123, %v219
    %v235 = vmul.f32 %v128, %v219
    %v236 = vmul.f32 %v133, %v219
    %v237 = vmul.f32 %v138, %v219
    %v238 = vmul.f32 %v143, %v219
    %v239 = vmul.f32 %v148, %v219
    %v240 = vmul.f32 %v153, %v219
    %v241 = vmul.f32 %v158, %v219
    %v242 = vmul.f32 %v163, %v219
    %v243 = vmul.f32 %v168, %v219
    %v244 = vmul.f32 %v173, %v219
    %v245 = vmul.f32 %v178, %v219
    %v246 = vmul.f32 %v183, %v219
    %v247 = vmul.f32 %v188, %v219
    %v248 = vmul.f32 %v193, %v219
    %v249 = vmul.f32 %v198, %v219
    %v250 = vmul.f32 %v203, %v219
    %v251 = vmul.f32 %v208, %v219
    %v252 = vmul.f32 %v213, %v219
    %v253 = vld [vmem:[%s2] sm:$0xff]
    %v254 = vld [vmem:[%s2 + $0x8] sm:$0xff]
    %v255 = vld [vmem:[%s2 + $0x10] sm:$0xff]
    %v256 = vld [vmem:[%s2 + $0x18] sm:$0xff]
    %v257 = vld [vmem:[%s2 + $0x20] sm:$0xff]
    %v258 = vld [vmem:[%s2 + $0x28] sm:$0xff]
    %v259 = vld [vmem:[%s2 + $0x30] sm:$0xff]
    %v260 = vld [vmem:[%s2 + $0x38] sm:$0xff]
    %v261 = vld [vmem:[%s2 + $0x40] sm:$0xff]
    %v262 = vld [vmem:[%s2 + $0x48] sm:$0xff]
    %v263 = vld [vmem:[%s2 + $0x50] sm:$0xff]
    %v264 = vld [vmem:[%s2 + $0x58] sm:$0xff]
    %v265 = vld [vmem:[%s2 + $0x60] sm:$0xff]
    %v266 = vld [vmem:[%s2 + $0x68] sm:$0xff]
    %v267 = vld [vmem:[%s2 + $0x70] sm:$0xff]
    %v268 = vld [vmem:[%s2 + $0x78] sm:$0xff]
    %v269 = vld [vmem:[%s2 + $0x80] sm:$0xff]
    %v270 = vld [vmem:[%s2 + $0x88] sm:$0xff]
    %v271 = vld [vmem:[%s2 + $0x90] sm:$0xff]
    %v272 = vld [vmem:[%s2 + $0x98] sm:$0xff]
    %v273 = vld [vmem:[%s2 + $0xa0] sm:$0xff]
    %v274 = vld [vmem:[%s2 + $0xa8] sm:$0xff]
    %v275 = vld [vmem:[%s2 + $0xb0] sm:$0xff]
    %v276 = vld [vmem:[%s2 + $0xb8] sm:$0xff]
    %v277 = vld [vmem:[%s2 + $0xc0] sm:$0xff]
    %v278 = vld [vmem:[%s2 + $0xc8] sm:$0xff]
    %v279 = vld [vmem:[%s2 + $0xd0] sm:$0xff]
    %v280 = vld [vmem:[%s2 + $0xd8] sm:$0xff]
    %v281 = vld [vmem:[%s2 + $0xe0] sm:$0xff]
    %v282 = vld [vmem:[%s2 + $0xe8] sm:$0xff]
    %v283 = vld [vmem:[%s2 + $0xf0] sm:$0xff]
    %v284 = vld [vmem:[%s2 + $0xf8] sm:$0xff]
    %286 = vset.pattern.permute.xlu0 0
    %287 = vperm.xlu0 %286, %v253
    %v288 = vpop.permute.xlu0 %287
    %291 = vset.pattern.permute.xlu0 0
    %292 = vperm.xlu0 %291, %v254
    %v293 = vpop.permute.xlu0 %292
    %296 = vset.pattern.permute.xlu0 0
    %297 = vperm.xlu0 %296, %v255
    %v298 = vpop.permute.xlu0 %297
    %301 = vset.pattern.permute.xlu0 0
    %302 = vperm.xlu0 %301, %v256
    %v303 = vpop.permute.xlu0 %302
    %306 = vset.pattern.permute.xlu0 0
    %307 = vperm.xlu0 %306, %v257
    %v308 = vpop.permute.xlu0 %307
    %311 = vset.pattern.permute.xlu0 0
    %312 = vperm.xlu0 %311, %v258
    %v313 = vpop.permute.xlu0 %312
    %316 = vset.pattern.permute.xlu0 0
    %317 = vperm.xlu0 %316, %v259
    %v318 = vpop.permute.xlu0 %317
    %321 = vset.pattern.permute.xlu0 0
    %322 = vperm.xlu0 %321, %v260
    %v323 = vpop.permute.xlu0 %322
    %326 = vset.pattern.permute.xlu0 0
    %327 = vperm.xlu0 %326, %v261
    %v328 = vpop.permute.xlu0 %327
    %331 = vset.pattern.permute.xlu0 0
    %332 = vperm.xlu0 %331, %v262
    %v333 = vpop.permute.xlu0 %332
    %336 = vset.pattern.permute.xlu0 0
    %337 = vperm.xlu0 %336, %v263
    %v338 = vpop.permute.xlu0 %337
    %341 = vset.pattern.permute.xlu0 0
    %342 = vperm.xlu0 %341, %v264
    %v343 = vpop.permute.xlu0 %342
    %346 = vset.pattern.permute.xlu0 0
    %347 = vperm.xlu0 %346, %v265
    %v348 = vpop.permute.xlu0 %347
    %351 = vset.pattern.permute.xlu0 0
    %352 = vperm.xlu0 %351, %v266
    %v353 = vpop.permute.xlu0 %352
    %356 = vset.pattern.permute.xlu0 0
    %357 = vperm.xlu0 %356, %v267
    %v358 = vpop.permute.xlu0 %357
    %361 = vset.pattern.permute.xlu0 0
    %362 = vperm.xlu0 %361, %v268
    %v363 = vpop.permute.xlu0 %362
    %366 = vset.pattern.permute.xlu0 0
    %367 = vperm.xlu0 %366, %v269
    %v368 = vpop.permute.xlu0 %367
    %371 = vset.pattern.permute.xlu0 0
    %372 = vperm.xlu0 %371, %v270
    %v373 = vpop.permute.xlu0 %372
    %376 = vset.pattern.permute.xlu0 0
    %377 = vperm.xlu0 %376, %v271
    %v378 = vpop.permute.xlu0 %377
    %381 = vset.pattern.permute.xlu0 0
    %382 = vperm.xlu0 %381, %v272
    %v383 = vpop.permute.xlu0 %382
    %386 = vset.pattern.permute.xlu0 0
    %387 = vperm.xlu0 %386, %v273
    %v388 = vpop.permute.xlu0 %387
    %391 = vset.pattern.permute.xlu0 0
    %392 = vperm.xlu0 %391, %v274
    %v393 = vpop.permute.xlu0 %392
    %396 = vset.pattern.permute.xlu0 0
    %397 = vperm.xlu0 %396, %v275
    %v398 = vpop.permute.xlu0 %397
    %401 = vset.pattern.permute.xlu0 0
    %402 = vperm.xlu0 %401, %v276
    %v403 = vpop.permute.xlu0 %402
    %406 = vset.pattern.permute.xlu0 0
    %407 = vperm.xlu0 %406, %v277
    %v408 = vpop.permute.xlu0 %407
    %411 = vset.pattern.permute.xlu0 0
    %412 = vperm.xlu0 %411, %v278
    %v413 = vpop.permute.xlu0 %412
    %416 = vset.pattern.permute.xlu0 0
    %417 = vperm.xlu0 %416, %v279
    %v418 = vpop.permute.xlu0 %417
    %421 = vset.pattern.permute.xlu0 0
    %422 = vperm.xlu0 %421, %v280
    %v423 = vpop.permute.xlu0 %422
    %426 = vset.pattern.permute.xlu0 0
    %427 = vperm.xlu0 %426, %v281
    %v428 = vpop.permute.xlu0 %427
    %431 = vset.pattern.permute.xlu0 0
    %432 = vperm.xlu0 %431, %v282
    %v433 = vpop.permute.xlu0 %432
    %436 = vset.pattern.permute.xlu0 0
    %437 = vperm.xlu0 %436, %v283
    %v438 = vpop.permute.xlu0 %437
    %441 = vset.pattern.permute.xlu0 0
    %442 = vperm.xlu0 %441, %v284
    %v443 = vpop.permute.xlu0 %442
    %v445 = vadd.f32 %v221, %v288
    %v446 = vadd.f32 %v222, %v293
    %v447 = vadd.f32 %v223, %v298
    %v448 = vadd.f32 %v224, %v303
    %v449 = vadd.f32 %v225, %v308
    %v450 = vadd.f32 %v226, %v313
    %v451 = vadd.f32 %v227, %v318
    %v452 = vadd.f32 %v228, %v323
    %v453 = vadd.f32 %v229, %v328
    %v454 = vadd.f32 %v230, %v333
    %v455 = vadd.f32 %v231, %v338
    %v456 = vadd.f32 %v232, %v343
    %v457 = vadd.f32 %v233, %v348
    %v458 = vadd.f32 %v234, %v353
    %v459 = vadd.f32 %v235, %v358
    %v460 = vadd.f32 %v236, %v363
    %v461 = vadd.f32 %v237, %v368
    %v462 = vadd.f32 %v238, %v373
    %v463 = vadd.f32 %v239, %v378
    %v464 = vadd.f32 %v240, %v383
    %v465 = vadd.f32 %v241, %v388
    %v466 = vadd.f32 %v242, %v393
    %v467 = vadd.f32 %v243, %v398
    %v468 = vadd.f32 %v244, %v403
    %v469 = vadd.f32 %v245, %v408
    %v470 = vadd.f32 %v246, %v413
    %v471 = vadd.f32 %v247, %v418
    %v472 = vadd.f32 %v248, %v423
    %v473 = vadd.f32 %v249, %v428
    %v474 = vadd.f32 %v250, %v433
    %v475 = vadd.f32 %v251, %v438
    %v476 = vadd.f32 %v252, %v443
    %v477 = vmax.f32 %v445, 0.0
    %v478 = vmax.f32 %v446, 0.0
    %v479 = vmax.f32 %v447, 0.0
    %v480 = vmax.f32 %v448, 0.0
    %v481 = vmax.f32 %v449, 0.0
    %v482 = vmax.f32 %v450, 0.0
    %v483 = vmax.f32 %v451, 0.0
    %v484 = vmax.f32 %v452, 0.0
    %v485 = vmax.f32 %v453, 0.0
    %v486 = vmax.f32 %v454, 0.0
    %v487 = vmax.f32 %v455, 0.0
    %v488 = vmax.f32 %v456, 0.0
    %v489 = vmax.f32 %v457, 0.0
    %v490 = vmax.f32 %v458, 0.0
    %v491 = vmax.f32 %v459, 0.0
    %v492 = vmax.f32 %v460, 0.0
    %v493 = vmax.f32 %v461, 0.0
    %v494 = vmax.f32 %v462, 0.0
    %v495 = vmax.f32 %v463, 0.0
    %v496 = vmax.f32 %v464, 0.0
    %v497 = vmax.f32 %v465, 0.0
    %v498 = vmax.f32 %v466, 0.0
    %v499 = vmax.f32 %v467, 0.0
    %v500 = vmax.f32 %v468, 0.0
    %v501 = vmax.f32 %v469, 0.0
    %v502 = vmax.f32 %v470, 0.0
    %v503 = vmax.f32 %v471, 0.0
    %v504 = vmax.f32 %v472, 0.0
    %v505 = vmax.f32 %v473, 0.0
    %v506 = vmax.f32 %v474, 0.0
    %v507 = vmax.f32 %v475, 0.0
    %v508 = vmax.f32 %v476, 0.0
    %v509 = vld [vmem:[%s3] sm:$0xff]
    %v510 = vld [vmem:[%s3 + $0x8] sm:$0xff]
    %v511 = vld [vmem:[%s3 + $0x10] sm:$0xff]
    %v512 = vld [vmem:[%s3 + $0x18] sm:$0xff]
    %v513 = vld [vmem:[%s3 + $0x20] sm:$0xff]
    %v514 = vld [vmem:[%s3 + $0x28] sm:$0xff]
    %v515 = vld [vmem:[%s3 + $0x30] sm:$0xff]
    %v516 = vld [vmem:[%s3 + $0x38] sm:$0xff]
    %v517 = vld [vmem:[%s3 + $0x40] sm:$0xff]
    %v518 = vld [vmem:[%s3 + $0x48] sm:$0xff]
    %v519 = vld [vmem:[%s3 + $0x50] sm:$0xff]
    %v520 = vld [vmem:[%s3 + $0x58] sm:$0xff]
    %v521 = vld [vmem:[%s3 + $0x60] sm:$0xff]
    %v522 = vld [vmem:[%s3 + $0x68] sm:$0xff]
    %v523 = vld [vmem:[%s3 + $0x70] sm:$0xff]
    %v524 = vld [vmem:[%s3 + $0x78] sm:$0xff]
    %v525 = vld [vmem:[%s3 + $0x80] sm:$0xff]
    %v526 = vld [vmem:[%s3 + $0x88] sm:$0xff]
    %v527 = vld [vmem:[%s3 + $0x90] sm:$0xff]
    %v528 = vld [vmem:[%s3 + $0x98] sm:$0xff]
    %v529 = vld [vmem:[%s3 + $0xa0] sm:$0xff]
    %v530 = vld [vmem:[%s3 + $0xa8] sm:$0xff]
    %v531 = vld [vmem:[%s3 + $0xb0] sm:$0xff]
    %v532 = vld [vmem:[%s3 + $0xb8] sm:$0xff]
    %v533 = vld [vmem:[%s3 + $0xc0] sm:$0xff]
    %v534 = vld [vmem:[%s3 + $0xc8] sm:$0xff]
    %v535 = vld [vmem:[%s3 + $0xd0] sm:$0xff]
    %v536 = vld [vmem:[%s3 + $0xd8] sm:$0xff]
    %v537 = vld [vmem:[%s3 + $0xe0] sm:$0xff]
    %v538 = vld [vmem:[%s3 + $0xe8] sm:$0xff]
    %v539 = vld [vmem:[%s3 + $0xf0] sm:$0xff]
    %v540 = vld [vmem:[%s3 + $0xf8] sm:$0xff]
    %542 = vset.pattern.permute.xlu0 0
    %543 = vperm.xlu0 %542, %v509
    %v544 = vpop.permute.xlu0 %543
    %547 = vset.pattern.permute.xlu0 0
    %548 = vperm.xlu0 %547, %v510
    %v549 = vpop.permute.xlu0 %548
    %552 = vset.pattern.permute.xlu0 0
    %553 = vperm.xlu0 %552, %v511
    %v554 = vpop.permute.xlu0 %553
    %557 = vset.pattern.permute.xlu0 0
    %558 = vperm.xlu0 %557, %v512
    %v559 = vpop.permute.xlu0 %558
    %562 = vset.pattern.permute.xlu0 0
    %563 = vperm.xlu0 %562, %v513
    %v564 = vpop.permute.xlu0 %563
    %567 = vset.pattern.permute.xlu0 0
    %568 = vperm.xlu0 %567, %v514
    %v569 = vpop.permute.xlu0 %568
    %572 = vset.pattern.permute.xlu0 0
    %573 = vperm.xlu0 %572, %v515
    %v574 = vpop.permute.xlu0 %573
    %577 = vset.pattern.permute.xlu0 0
    %578 = vperm.xlu0 %577, %v516
    %v579 = vpop.permute.xlu0 %578
    %582 = vset.pattern.permute.xlu0 0
    %583 = vperm.xlu0 %582, %v517
    %v584 = vpop.permute.xlu0 %583
    %587 = vset.pattern.permute.xlu0 0
    %588 = vperm.xlu0 %587, %v518
    %v589 = vpop.permute.xlu0 %588
    %592 = vset.pattern.permute.xlu0 0
    %593 = vperm.xlu0 %592, %v519
    %v594 = vpop.permute.xlu0 %593
    %597 = vset.pattern.permute.xlu0 0
    %598 = vperm.xlu0 %597, %v520
    %v599 = vpop.permute.xlu0 %598
    %602 = vset.pattern.permute.xlu0 0
    %603 = vperm.xlu0 %602, %v521
    %v604 = vpop.permute.xlu0 %603
    %607 = vset.pattern.permute.xlu0 0
    %608 = vperm.xlu0 %607, %v522
    %v609 = vpop.permute.xlu0 %608
    %612 = vset.pattern.permute.xlu0 0
    %613 = vperm.xlu0 %612, %v523
    %v614 = vpop.permute.xlu0 %613
    %617 = vset.pattern.permute.xlu0 0
    %618 = vperm.xlu0 %617, %v524
    %v619 = vpop.permute.xlu0 %618
    %622 = vset.pattern.permute.xlu0 0
    %623 = vperm.xlu0 %622, %v525
    %v624 = vpop.permute.xlu0 %623
    %627 = vset.pattern.permute.xlu0 0
    %628 = vperm.xlu0 %627, %v526
    %v629 = vpop.permute.xlu0 %628
    %632 = vset.pattern.permute.xlu0 0
    %633 = vperm.xlu0 %632, %v527
    %v634 = vpop.permute.xlu0 %633
    %637 = vset.pattern.permute.xlu0 0
    %638 = vperm.xlu0 %637, %v528
    %v639 = vpop.permute.xlu0 %638
    %642 = vset.pattern.permute.xlu0 0
    %643 = vperm.xlu0 %642, %v529
    %v644 = vpop.permute.xlu0 %643
    %647 = vset.pattern.permute.xlu0 0
    %648 = vperm.xlu0 %647, %v530
    %v649 = vpop.permute.xlu0 %648
    %652 = vset.pattern.permute.xlu0 0
    %653 = vperm.xlu0 %652, %v531
    %v654 = vpop.permute.xlu0 %653
    %657 = vset.pattern.permute.xlu0 0
    %658 = vperm.xlu0 %657, %v532
    %v659 = vpop.permute.xlu0 %658
    %662 = vset.pattern.permute.xlu0 0
    %663 = vperm.xlu0 %662, %v533
    %v664 = vpop.permute.xlu0 %663
    %667 = vset.pattern.permute.xlu0 0
    %668 = vperm.xlu0 %667, %v534
    %v669 = vpop.permute.xlu0 %668
    %672 = vset.pattern.permute.xlu0 0
    %673 = vperm.xlu0 %672, %v535
    %v674 = vpop.permute.xlu0 %673
    %677 = vset.pattern.permute.xlu0 0
    %678 = vperm.xlu0 %677, %v536
    %v679 = vpop.permute.xlu0 %678
    %682 = vset.pattern.permute.xlu0 0
    %683 = vperm.xlu0 %682, %v537
    %v684 = vpop.permute.xlu0 %683
    %687 = vset.pattern.permute.xlu0 0
    %688 = vperm.xlu0 %687, %v538
    %v689 = vpop.permute.xlu0 %688
    %692 = vset.pattern.permute.xlu0 0
    %693 = vperm.xlu0 %692, %v539
    %v694 = vpop.permute.xlu0 %693
    %697 = vset.pattern.permute.xlu0 0
    %698 = vperm.xlu0 %697, %v540
    %v699 = vpop.permute.xlu0 %698
    %v701 = vmul.f32 %v477, %v544
    %v702 = vmul.f32 %v478, %v549
    %v703 = vmul.f32 %v479, %v554
    %v704 = vmul.f32 %v480, %v559
    %v705 = vmul.f32 %v481, %v564
    %v706 = vmul.f32 %v482, %v569
    %v707 = vmul.f32 %v483, %v574
    %v708 = vmul.f32 %v484, %v579
    %v709 = vmul.f32 %v485, %v584
    %v710 = vmul.f32 %v486, %v589
    %v711 = vmul.f32 %v487, %v594
    %v712 = vmul.f32 %v488, %v599
    %v713 = vmul.f32 %v489, %v604
    %v714 = vmul.f32 %v490, %v609
    %v715 = vmul.f32 %v491, %v614
    %v716 = vmul.f32 %v492, %v619
    %v717 = vmul.f32 %v493, %v624
    %v718 = vmul.f32 %v494, %v629
    %v719 = vmul.f32 %v495, %v634
    %v720 = vmul.f32 %v496, %v639
    %v721 = vmul.f32 %v497, %v644
    %v722 = vmul.f32 %v498, %v649
    %v723 = vmul.f32 %v499, %v654
    %v724 = vmul.f32 %v500, %v659
    %v725 = vmul.f32 %v501, %v664
    %v726 = vmul.f32 %v502, %v669
    %v727 = vmul.f32 %v503, %v674
    %v728 = vmul.f32 %v504, %v679
    %v729 = vmul.f32 %v505, %v684
    %v730 = vmul.f32 %v506, %v689
    %v731 = vmul.f32 %v507, %v694
    %v732 = vmul.f32 %v508, %v699
    %vm733 = vcmask 64512
    %v734 = vsel %vm733, %v701, 0.0
    %v735 = vsel %vm733, %v702, 0.0
    %v736 = vadd.f32 %v734, %v735
    %v737 = vsel %vm733, %v703, 0.0
    %v738 = vadd.f32 %v736, %v737
    %v739 = vsel %vm733, %v704, 0.0
    %v740 = vadd.f32 %v738, %v739
    %v741 = vsel %vm733, %v705, 0.0
    %v742 = vadd.f32 %v740, %v741
    %v743 = vsel %vm733, %v706, 0.0
    %v744 = vadd.f32 %v742, %v743
    %v745 = vsel %vm733, %v707, 0.0
    %v746 = vadd.f32 %v744, %v745
    %v747 = vsel %vm733, %v708, 0.0
    %v748 = vadd.f32 %v746, %v747
    %v749 = vsel %vm733, %v709, 0.0
    %v750 = vadd.f32 %v748, %v749
    %v751 = vsel %vm733, %v710, 0.0
    %v752 = vadd.f32 %v750, %v751
    %v753 = vsel %vm733, %v711, 0.0
    %v754 = vadd.f32 %v752, %v753
    %v755 = vsel %vm733, %v712, 0.0
    %v756 = vadd.f32 %v754, %v755
    %v757 = vsel %vm733, %v713, 0.0
    %v758 = vadd.f32 %v756, %v757
    %v759 = vsel %vm733, %v714, 0.0
    %v760 = vadd.f32 %v758, %v759
    %v761 = vsel %vm733, %v715, 0.0
    %v762 = vadd.f32 %v760, %v761
    %v763 = vsel %vm733, %v716, 0.0
    %v764 = vadd.f32 %v762, %v763
    %v765 = vsel %vm733, %v717, 0.0
    %v766 = vadd.f32 %v764, %v765
    %v767 = vsel %vm733, %v718, 0.0
    %v768 = vadd.f32 %v766, %v767
    %v769 = vsel %vm733, %v719, 0.0
    %v770 = vadd.f32 %v768, %v769
    %v771 = vsel %vm733, %v720, 0.0
    %v772 = vadd.f32 %v770, %v771
    %v773 = vsel %vm733, %v721, 0.0
    %v774 = vadd.f32 %v772, %v773
    %v775 = vsel %vm733, %v722, 0.0
    %v776 = vadd.f32 %v774, %v775
    %v777 = vsel %vm733, %v723, 0.0
    %v778 = vadd.f32 %v776, %v777
    %v779 = vsel %vm733, %v724, 0.0
    %v780 = vadd.f32 %v778, %v779
    %v781 = vsel %vm733, %v725, 0.0
    %v782 = vadd.f32 %v780, %v781
    %v783 = vsel %vm733, %v726, 0.0
    %v784 = vadd.f32 %v782, %v783
    %v785 = vsel %vm733, %v727, 0.0
    %v786 = vadd.f32 %v784, %v785
    %v787 = vsel %vm733, %v728, 0.0
    %v788 = vadd.f32 %v786, %v787
    %v789 = vsel %vm733, %v729, 0.0
    %v790 = vadd.f32 %v788, %v789
    %v791 = vsel %vm733, %v730, 0.0
    %v792 = vadd.f32 %v790, %v791
    %v793 = vsel %vm733, %v731, 0.0
    %v794 = vadd.f32 %v792, %v793
    %v795 = vsel %vm733, %v732, 0.0
    %v796 = vadd.f32 %v794, %v795
    %v797 = vrot.slane %v796, 4
    %v798 = vadd.f32 %v796, %v797
    %v799 = vrot.slane %v798, 2
    %v800 = vadd.f32 %v798, %v799
    %v801 = vrot.slane %v800, 1
    %v802 = vadd.f32 %v800, %v801
    %s803 = sld [smem:[#allocation2]]
    %v804 = vstv %s803
    %v805 = vadd.f32 %v802, %v804
    %vm806 = vcmask 57344
    %807 = vst.msk [vmem:[#allocation3] sm:$0x1] %vm806, %v805
    // Predicated region
    $region22: #{tpu_custom_call.1} parent=1 // pred_check
      _
    $region23: #{tpu_custom_call.1} parent=1 // pred_check_branch
      %809 = sbr.rel (0) target = $region25
    $region24: #{tpu_custom_call.1} parent=1 // pred_region
      %s811 = ssub.s32 16, 16
      %812 = vsyncadd [#allocation4], %s811
      %s814 = sshll.u32 [#allocation3], 4
      %s815 = int_to_ptr.vmem [resolvable:$true] %s814
      %817 = dma.vmem_to_hbm [thread:$0]  %s815, 16, %s5, [#allocation4]
    $region25: #{tpu_custom_call.1} parent=1 // pred_fallthru
      _
    // Predicated region
    $region26: #{tpu_custom_call.1} parent=1 // pred_check
      _
    $region27: #{tpu_custom_call.1} parent=1 // pred_check_branch
      %819 = sbr.rel (0) target = $region29
    $region28: #{tpu_custom_call.1} parent=1 // pred_region
      %820 = dma.done [#allocation4], 16
    $region29: #{tpu_custom_call.1} parent=1 // pred_fallthru
      _
    %821 = vsyncpa [#allocation4], 1

</llo_original>
